<compile_context>
chip_gen: v6e
topology: v6e:2x2x1
jax: 0.10.0
libtpu: 0.0.40
codegen_flags: <defaults>
</compile_context>

<pallas_src>
import jax
import jax.numpy as jnp
from jax.experimental import pallas as pl
from jax.experimental.pallas import tpu as pltpu

H = 32        # SAGEConv hidden width (logical)
HP = 128      # lane-padded hidden width carried through the kernel
LANE = 128    # lane-dense head output width


def _vmem_spec():
    # Whole-array blocks resident in VMEM (all operands here are tiny).
    return pl.BlockSpec(memory_space=pltpu.MemorySpace.VMEM)


def _round_up(n, m):
    return ((n + m - 1) // m) * m


# ------------------------------ fused kernel -------------------------------- #

def fused_hetero_sage_kernel(xp_ref, xa_ref, acat_ref, apa_ref,
                             w1p_ref, w1a_ref, b1p_ref, b1a_ref,
                             w2p_ref, w2a_ref, b2p_ref,
                             wh_ref, bh_ref, o_ref, ycat_ref):
    f32, bf16 = jnp.float32, jnp.bfloat16
    np_pad = xp_ref.shape[0]
    na_pad = xa_ref.shape[0]

    # ---------------- layer 1: packed per-source projections ----------------
    # yp = x_paper  @ [Wl1_pp | Wl1_pa | (Wr1_pp + Wr1_ap)]  (each segment 128-lane padded)
    # ya = x_author @ [Wl1_ap | Wr1_pa]
    yp = jnp.dot(xp_ref[...], w1p_ref[...], preferred_element_type=f32)   # [Np, 3*HP]
    ya = jnp.dot(xa_ref[...], w1a_ref[...], preferred_element_type=f32)   # [Na, 2*HP]

    # Stack neighbor messages (bf16 scratch) so ONE matmul aggregates both edge types
    # into 'paper' (A_cat = [A_pp | A_ap] was concatenated on the host).
    ycat_ref[0:np_pad, :] = yp[:, 0:HP].astype(bf16)               # paper -> paper msgs
    ycat_ref[np_pad:np_pad + na_pad, :] = ya[:, 0:HP].astype(bf16)  # author -> paper msgs
    nbr_p = jnp.dot(acat_ref[...], ycat_ref[...], preferred_element_type=f32)   # [Np, HP]
    h_p = jnp.maximum(nbr_p + yp[:, 2 * HP:3 * HP] + b1p_ref[...], 0.0)

    nbr_a = jnp.dot(apa_ref[...], yp[:, HP:2 * HP].astype(bf16),
                    preferred_element_type=f32)                               # [Na, HP]
    h_a = jnp.maximum(nbr_a + ya[:, HP:2 * HP] + b1a_ref[...], 0.0)

    # ---------------- layer 2 (only the 'paper' output feeds the head) ------
    # zp = h_p @ [Wl2_pp | (Wr2_pp + Wr2_ap)];  za = h_a @ Wl2_ap
    zp = jnp.dot(h_p.astype(bf16), w2p_ref[...], preferred_element_type=f32)  # [Np, 2*HP]
    za = jnp.dot(h_a.astype(bf16), w2a_ref[...], preferred_element_type=f32)  # [Na, HP]

    ycat_ref[0:np_pad, :] = zp[:, 0:HP].astype(bf16)
    ycat_ref[np_pad:np_pad + na_pad, :] = za.astype(bf16)
    nbr2 = jnp.dot(acat_ref[...], ycat_ref[...], preferred_element_type=f32)
    z_p = nbr2 + zp[:, HP:2 * HP] + b2p_ref[...]

    # ---------------- Linear(32, 1) head, lane-dense padded output ----------
    o_ref[...] = jnp.dot(z_p.astype(bf16), wh_ref[...],
                         preferred_element_type=f32) + bh_ref[...]


# ------------------------------ wrapper / glue ------------------------------ #

def mean_adjacency(edge_index, n_src, n_dst):
    """Dense mean-normalized adjacency: A[d, s] = (#edges s->d) / (#edges into d)."""
    src, dst = edge_index[0], edge_index[1]
    A = jnp.zeros((n_dst, n_src), jnp.float32).at[dst, src].add(1.0)
    deg = A.sum(axis=1, keepdims=True)
    return A / jnp.maximum(deg, 1.0)   # isolated dst nodes -> zero row (PyG scatter-mean)


def init_params(key, f_paper, f_author):
    def lin_w(k, fin, fout, scale=0.1):
        return scale * jax.random.normal(k, (fin, fout), jnp.float32)

    ks = jax.random.split(key, 20)
    p = {}
    # layer 1: (Wl [src_feat,H], bl [1,H], Wr [dst_feat,H]) per edge type
    p['c1_pp'] = (lin_w(ks[0], f_paper, H), lin_w(ks[1], 1, H), lin_w(ks[2], f_paper, H))
    p['c1_ap'] = (lin_w(ks[3], f_author, H), lin_w(ks[4], 1, H), lin_w(ks[5], f_paper, H))
    p['c1_pa'] = (lin_w(ks[6], f_paper, H), lin_w(ks[7], 1, H), lin_w(ks[8], f_author, H))
    # layer 2: all 32 -> 32
    p['c2_pp'] = (lin_w(ks[9], H, H), lin_w(ks[10], 1, H), lin_w(ks[11], H, H))
    p['c2_ap'] = (lin_w(ks[12], H, H), lin_w(ks[13], 1, H), lin_w(ks[14], H, H))
    # final head Linear(32, 1)
    p['lin_w'] = lin_w(ks[15], H, 1)
    p['lin_b'] = lin_w(ks[16], 1, 1)
    return p


def _seg(w, rows, cols=HP):
    """Place w in the top-left corner of a zero [rows, cols] lane-aligned segment."""
    return jnp.zeros((rows, cols), jnp.float32).at[:w.shape[0], :w.shape[1]].set(w)


def hetero_sage_forward(x_paper, x_author, A_pp, A_ap, A_pa, params):
    bf16 = jnp.bfloat16
    n_p, f_p = x_paper.shape
    n_a, f_a = x_author.shape
    # bf16 packs 16 rows per sublane group -> 16-row padding keeps the scratch split vreg-clean
    np_pad = _round_up(n_p, 16)
    na_pad = _round_up(n_a, 16)

    def pad_rows(x, n):
        return jnp.pad(x, ((0, n - x.shape[0]), (0, 0)))

    def pad_cols(x, n):
        return jnp.pad(x, ((0, 0), (0, n - x.shape[1])))

    # Zero-padded nodes have zero adjacency columns -> no contribution to real outputs.
    x_p = pad_rows(x_paper, np_pad)
    x_a = pad_rows(x_author, na_pad)
    A_pp_p = pad_cols(pad_rows(A_pp, np_pad), np_pad)
    A_ap_p = pad_cols(pad_rows(A_ap, np_pad), na_pad)
    A_pa_p = pad_cols(pad_rows(A_pa, na_pad), np_pad)
    A_cat = jnp.concatenate([A_pp_p, A_ap_p], axis=1)          # [Np, Np+Na]

    wl1_pp, bl1_pp, wr1_pp = params['c1_pp']
    wl1_ap, bl1_ap, wr1_ap = params['c1_ap']
    wl1_pa, bl1_pa, wr1_pa = params['c1_pa']
    wl2_pp, bl2_pp, wr2_pp = params['c2_pp']
    wl2_ap, bl2_ap, wr2_ap = params['c2_ap']

    # Pack per-source weights along the output axis with 128-lane-aligned segments;
    # pre-sum the dual root weights / biases (both edge types land on 'paper').
    w1p = jnp.concatenate([_seg(wl1_pp, f_p), _seg(wl1_pa, f_p),
                           _seg(wr1_pp + wr1_ap, f_p)], axis=1).astype(bf16)   # [Fp, 3*HP]
    w1a = jnp.concatenate([_seg(wl1_ap, f_a), _seg(wr1_pa, f_a)],
                          axis=1).astype(bf16)                                 # [Fa, 2*HP]
    b1p = _seg(bl1_pp + bl1_ap, 1)                                             # [1, HP]
    b1a = _seg(bl1_pa, 1)
    w2p = jnp.concatenate([_seg(wl2_pp, HP), _seg(wr2_pp + wr2_ap, HP)],
                          axis=1).astype(bf16)                                 # [HP, 2*HP]
    w2a = _seg(wl2_ap, HP).astype(bf16)                                        # [HP, HP]
    b2p = _seg(bl2_pp + bl2_ap, 1)

    # Lane-dense head: pad Linear(32, out) weights to 128 output lanes, slice after.
    out_ch = params['lin_w'].shape[1]
    wh = _seg(params['lin_w'], HP, LANE).astype(bf16)
    bh = _seg(params['lin_b'], 1, LANE)

    operands = (x_p.astype(bf16), x_a.astype(bf16), A_cat.astype(bf16), A_pa_p.astype(bf16),
                w1p, w1a, b1p, b1a, w2p, w2a, b2p, wh, bh)

    # Size the scoped-VMEM limit from the actual operand/output/scratch bytes (+headroom),
    # kept within the smallest physical VMEM (64 MiB on v7x).
    total_bytes = sum(int(a.size) * a.dtype.itemsize for a in operands)
    total_bytes += np_pad * LANE * 4                       # f32 output slab
    total_bytes += (np_pad + na_pad) * HP * 2              # bf16 ycat scratch
    vmem_limit = int(min(64 << 20, max(32 << 20, 2 * total_bytes + (2 << 20))))

    out_pad = pl.pallas_call(
        fused_hetero_sage_kernel,
        out_shape=jax.ShapeDtypeStruct((np_pad, LANE), jnp.float32),
        in_specs=[_vmem_spec()] * len(operands),
        out_specs=_vmem_spec(),
        scratch_shapes=[pltpu.VMEM((np_pad + na_pad, HP), jnp.bfloat16)],
        compiler_params=pltpu.CompilerParams(vmem_limit_bytes=vmem_limit),
    )(*operands)

    return out_pad[:n_p, :out_ch]


# ------------------------------------ main ----------------------------------- #

if __name__ == "__main__":
    key = jax.random.PRNGKey(0)
    k_xp, k_xa, k_e1, k_e2, k_e3, k_p = jax.random.split(key, 6)

    N_PAPER, N_AUTHOR = 8, 10
    F_PAPER, F_AUTHOR = 16, 8

    x_paper = jax.random.normal(k_xp, (N_PAPER, F_PAPER), jnp.float32)
    x_author = jax.random.normal(k_xa, (N_AUTHOR, F_AUTHOR), jnp.float32)

    def rand_edges(k, e, n_src, n_dst):
        ks, kd = jax.random.split(k)
        return jnp.stack([jax.random.randint(ks, (e,), 0, n_src),
                          jax.random.randint(kd, (e,), 0, n_dst)])

    ei_pp = rand_edges(k_e1, 24, N_PAPER, N_PAPER)     # ('paper','to','paper')
    ei_ap = rand_edges(k_e2, 20, N_AUTHOR, N_PAPER)    # ('author','to','paper')
    ei_pa = rand_edges(k_e3, 20, N_PAPER, N_AUTHOR)    # ('paper','to','author')

    A_pp = mean_adjacency(ei_pp, N_PAPER, N_PAPER)
    A_ap = mean_adjacency(ei_ap, N_AUTHOR, N_PAPER)
    A_pa = mean_adjacency(ei_pa, N_PAPER, N_AUTHOR)

    params = init_params(k_p, F_PAPER, F_AUTHOR)

    out = hetero_sage_forward(x_paper, x_author, A_pp, A_ap, A_pa, params)
    out = jax.block_until_ready(out)
    assert out.shape == (N_PAPER, 1) and out.dtype == jnp.float32
    print("KERNEL_OK")
</pallas_src>

<mosaic_0001>
module attributes {stable_mosaic.version = 11 : i64} {
  func.func @fused_hetero_sage_kernel(%arg0: memref<16x16xbf16, #tpu.memory_space<vmem>>, %arg1: memref<16x8xbf16, #tpu.memory_space<vmem>>, %arg2: memref<16x32xbf16, #tpu.memory_space<vmem>>, %arg3: memref<16x16xbf16, #tpu.memory_space<vmem>>, %arg4: memref<16x384xbf16, #tpu.memory_space<vmem>>, %arg5: memref<8x256xbf16, #tpu.memory_space<vmem>>, %arg6: memref<1x128xf32, #tpu.memory_space<vmem>>, %arg7: memref<1x128xf32, #tpu.memory_space<vmem>>, %arg8: memref<128x256xbf16, #tpu.memory_space<vmem>>, %arg9: memref<128x128xbf16, #tpu.memory_space<vmem>>, %arg10: memref<1x128xf32, #tpu.memory_space<vmem>>, %arg11: memref<128x128xbf16, #tpu.memory_space<vmem>>, %arg12: memref<1x128xf32, #tpu.memory_space<vmem>>, %arg13: memref<16x128xf32, #tpu.memory_space<vmem>>, %arg14: memref<32x128xbf16, #tpu.memory_space<vmem>>) attributes {dimension_semantics = [], scalar_prefetch = 0 : i64, scratch_operands = 1 : i64, tpu.core_type = #tpu.core_type<tc>} {
    %c0 = arith.constant 0 : index
    %c0_0 = arith.constant 0 : index
    %0 = vector.load %arg0[%c0, %c0_0] : memref<16x16xbf16, #tpu.memory_space<vmem>>, vector<16x16xbf16>
    %c0_1 = arith.constant 0 : index
    %c0_2 = arith.constant 0 : index
    %1 = vector.load %arg4[%c0_1, %c0_2] : memref<16x384xbf16, #tpu.memory_space<vmem>>, vector<16x384xbf16>
    %cst = arith.constant dense<0.000000e+00> : vector<16x384xf32>
    %2 = tpu.matmul %0, %1, %cst {dimension_numbers = #tpu.dot_dimension_numbers<[1], [0], [0], [1], [0, 0, 1, 1], [], []>} : vector<16x16xbf16>, vector<16x384xbf16>, vector<16x384xf32> -> vector<16x384xf32>
    %c0_3 = arith.constant 0 : index
    %c0_4 = arith.constant 0 : index
    %3 = vector.load %arg1[%c0_3, %c0_4] : memref<16x8xbf16, #tpu.memory_space<vmem>>, vector<16x8xbf16>
    %c0_5 = arith.constant 0 : index
    %c0_6 = arith.constant 0 : index
    %4 = vector.load %arg5[%c0_5, %c0_6] : memref<8x256xbf16, #tpu.memory_space<vmem>>, vector<8x256xbf16>
    %cst_7 = arith.constant dense<0.000000e+00> : vector<16x256xf32>
    %5 = tpu.matmul %3, %4, %cst_7 {dimension_numbers = #tpu.dot_dimension_numbers<[1], [0], [0], [1], [0, 0, 1, 1], [], []>} : vector<16x8xbf16>, vector<8x256xbf16>, vector<16x256xf32> -> vector<16x256xf32>
    %6 = vector.extract_strided_slice %2 {offsets = [0, 0], sizes = [16, 128], strides = [1, 1]} : vector<16x384xf32> to vector<16x128xf32>
    %7 = arith.truncf %6 : vector<16x128xf32> to vector<16x128xbf16>
    %c0_8 = arith.constant 0 : index
    %c0_9 = arith.constant 0 : index
    %8 = vector.load %arg14[%c0_8, %c0_9] : memref<32x128xbf16, #tpu.memory_space<vmem>>, vector<16x128xbf16>
    tpu.vector_store %arg14[%c0_8, %c0_9], %7 {strides = array<i32>} : memref<32x128xbf16, #tpu.memory_space<vmem>>, vector<16x128xbf16>,
    %9 = vector.extract_strided_slice %5 {offsets = [0, 0], sizes = [16, 128], strides = [1, 1]} : vector<16x256xf32> to vector<16x128xf32>
    %10 = arith.truncf %9 : vector<16x128xf32> to vector<16x128xbf16>
    %c16 = arith.constant 16 : index
    %c0_10 = arith.constant 0 : index
    %11 = vector.load %arg14[%c16, %c0_10] : memref<32x128xbf16, #tpu.memory_space<vmem>>, vector<16x128xbf16>
    tpu.vector_store %arg14[%c16, %c0_10], %10 {strides = array<i32>} : memref<32x128xbf16, #tpu.memory_space<vmem>>, vector<16x128xbf16>,
    %c0_11 = arith.constant 0 : index
    %c0_12 = arith.constant 0 : index
    %12 = vector.load %arg2[%c0_11, %c0_12] : memref<16x32xbf16, #tpu.memory_space<vmem>>, vector<16x32xbf16>
    %c0_13 = arith.constant 0 : index
    %c0_14 = arith.constant 0 : index
    %13 = vector.load %arg14[%c0_13, %c0_14] : memref<32x128xbf16, #tpu.memory_space<vmem>>, vector<32x128xbf16>
    %cst_15 = arith.constant dense<0.000000e+00> : vector<16x128xf32>
    %14 = tpu.matmul %12, %13, %cst_15 {dimension_numbers = #tpu.dot_dimension_numbers<[1], [0], [0], [1], [0, 0, 1, 1], [], []>} : vector<16x32xbf16>, vector<32x128xbf16>, vector<16x128xf32> -> vector<16x128xf32>
    %15 = vector.extract_strided_slice %2 {offsets = [0, 256], sizes = [16, 128], strides = [1, 1]} : vector<16x384xf32> to vector<16x128xf32>
    %16 = arith.addf %14, %15 : vector<16x128xf32>
    %c0_16 = arith.constant 0 : index
    %c0_17 = arith.constant 0 : index
    %17 = vector.load %arg6[%c0_16, %c0_17] : memref<1x128xf32, #tpu.memory_space<vmem>>, vector<1x128xf32>
    %18 = vector.broadcast %17 : vector<1x128xf32> to vector<16x128xf32>
    %19 = arith.addf %16, %18 : vector<16x128xf32>
    %cst_18 = arith.constant 0.000000e+00 : f32
    %20 = vector.broadcast %cst_18 : f32 to vector<16x128xf32>
    %21 = arith.maximumf %19, %20 : vector<16x128xf32>
    %c0_19 = arith.constant 0 : index
    %c0_20 = arith.constant 0 : index
    %22 = vector.load %arg3[%c0_19, %c0_20] : memref<16x16xbf16, #tpu.memory_space<vmem>>, vector<16x16xbf16>
    %23 = vector.extract_strided_slice %2 {offsets = [0, 128], sizes = [16, 128], strides = [1, 1]} : vector<16x384xf32> to vector<16x128xf32>
    %24 = arith.truncf %23 : vector<16x128xf32> to vector<16x128xbf16>
    %cst_21 = arith.constant dense<0.000000e+00> : vector<16x128xf32>
    %25 = tpu.matmul %22, %24, %cst_21 {dimension_numbers = #tpu.dot_dimension_numbers<[1], [0], [0], [1], [0, 0, 1, 1], [], []>} : vector<16x16xbf16>, vector<16x128xbf16>, vector<16x128xf32> -> vector<16x128xf32>
    %26 = vector.extract_strided_slice %5 {offsets = [0, 128], sizes = [16, 128], strides = [1, 1]} : vector<16x256xf32> to vector<16x128xf32>
    %27 = arith.addf %25, %26 : vector<16x128xf32>
    %c0_22 = arith.constant 0 : index
    %c0_23 = arith.constant 0 : index
    %28 = vector.load %arg7[%c0_22, %c0_23] : memref<1x128xf32, #tpu.memory_space<vmem>>, vector<1x128xf32>
    %29 = vector.broadcast %28 : vector<1x128xf32> to vector<16x128xf32>
    %30 = arith.addf %27, %29 : vector<16x128xf32>
    %cst_24 = arith.constant 0.000000e+00 : f32
    %31 = vector.broadcast %cst_24 : f32 to vector<16x128xf32>
    %32 = arith.maximumf %30, %31 : vector<16x128xf32>
    %33 = arith.truncf %21 : vector<16x128xf32> to vector<16x128xbf16>
    %c0_25 = arith.constant 0 : index
    %c0_26 = arith.constant 0 : index
    %34 = vector.load %arg8[%c0_25, %c0_26] : memref<128x256xbf16, #tpu.memory_space<vmem>>, vector<128x256xbf16>
    %cst_27 = arith.constant dense<0.000000e+00> : vector<16x256xf32>
    %35 = tpu.matmul %33, %34, %cst_27 {dimension_numbers = #tpu.dot_dimension_numbers<[1], [0], [0], [1], [0, 0, 1, 1], [], []>} : vector<16x128xbf16>, vector<128x256xbf16>, vector<16x256xf32> -> vector<16x256xf32>
    %36 = arith.truncf %32 : vector<16x128xf32> to vector<16x128xbf16>
    %c0_28 = arith.constant 0 : index
    %c0_29 = arith.constant 0 : index
    %37 = vector.load %arg9[%c0_28, %c0_29] : memref<128x128xbf16, #tpu.memory_space<vmem>>, vector<128x128xbf16>
    %cst_30 = arith.constant dense<0.000000e+00> : vector<16x128xf32>
    %38 = tpu.matmul %36, %37, %cst_30 {dimension_numbers = #tpu.dot_dimension_numbers<[1], [0], [0], [1], [0, 0, 1, 1], [], []>} : vector<16x128xbf16>, vector<128x128xbf16>, vector<16x128xf32> -> vector<16x128xf32>
    %39 = vector.extract_strided_slice %35 {offsets = [0, 0], sizes = [16, 128], strides = [1, 1]} : vector<16x256xf32> to vector<16x128xf32>
    %40 = arith.truncf %39 : vector<16x128xf32> to vector<16x128xbf16>
    %c0_31 = arith.constant 0 : index
    %c0_32 = arith.constant 0 : index
    %41 = vector.load %arg14[%c0_31, %c0_32] : memref<32x128xbf16, #tpu.memory_space<vmem>>, vector<16x128xbf16>
    tpu.vector_store %arg14[%c0_31, %c0_32], %40 {strides = array<i32>} : memref<32x128xbf16, #tpu.memory_space<vmem>>, vector<16x128xbf16>,
    %42 = arith.truncf %38 : vector<16x128xf32> to vector<16x128xbf16>
    %c16_33 = arith.constant 16 : index
    %c0_34 = arith.constant 0 : index
    %43 = vector.load %arg14[%c16_33, %c0_34] : memref<32x128xbf16, #tpu.memory_space<vmem>>, vector<16x128xbf16>
    tpu.vector_store %arg14[%c16_33, %c0_34], %42 {strides = array<i32>} : memref<32x128xbf16, #tpu.memory_space<vmem>>, vector<16x128xbf16>,
    %c0_35 = arith.constant 0 : index
    %c0_36 = arith.constant 0 : index
    %44 = vector.load %arg2[%c0_35, %c0_36] : memref<16x32xbf16, #tpu.memory_space<vmem>>, vector<16x32xbf16>
    %c0_37 = arith.constant 0 : index
    %c0_38 = arith.constant 0 : index
    %45 = vector.load %arg14[%c0_37, %c0_38] : memref<32x128xbf16, #tpu.memory_space<vmem>>, vector<32x128xbf16>
    %cst_39 = arith.constant dense<0.000000e+00> : vector<16x128xf32>
    %46 = tpu.matmul %44, %45, %cst_39 {dimension_numbers = #tpu.dot_dimension_numbers<[1], [0], [0], [1], [0, 0, 1, 1], [], []>} : vector<16x32xbf16>, vector<32x128xbf16>, vector<16x128xf32> -> vector<16x128xf32>
    %47 = vector.extract_strided_slice %35 {offsets = [0, 128], sizes = [16, 128], strides = [1, 1]} : vector<16x256xf32> to vector<16x128xf32>
    %48 = arith.addf %46, %47 : vector<16x128xf32>
    %c0_40 = arith.constant 0 : index
    %c0_41 = arith.constant 0 : index
    %49 = vector.load %arg10[%c0_40, %c0_41] : memref<1x128xf32, #tpu.memory_space<vmem>>, vector<1x128xf32>
    %50 = vector.broadcast %49 : vector<1x128xf32> to vector<16x128xf32>
    %51 = arith.addf %48, %50 : vector<16x128xf32>
    %52 = arith.truncf %51 : vector<16x128xf32> to vector<16x128xbf16>
    %c0_42 = arith.constant 0 : index
    %c0_43 = arith.constant 0 : index
    %53 = vector.load %arg11[%c0_42, %c0_43] : memref<128x128xbf16, #tpu.memory_space<vmem>>, vector<128x128xbf16>
    %cst_44 = arith.constant dense<0.000000e+00> : vector<16x128xf32>
    %54 = tpu.matmul %52, %53, %cst_44 {dimension_numbers = #tpu.dot_dimension_numbers<[1], [0], [0], [1], [0, 0, 1, 1], [], []>} : vector<16x128xbf16>, vector<128x128xbf16>, vector<16x128xf32> -> vector<16x128xf32>
    %c0_45 = arith.constant 0 : index
    %c0_46 = arith.constant 0 : index
    %55 = vector.load %arg12[%c0_45, %c0_46] : memref<1x128xf32, #tpu.memory_space<vmem>>, vector<1x128xf32>
    %56 = vector.broadcast %55 : vector<1x128xf32> to vector<16x128xf32>
    %57 = arith.addf %54, %56 : vector<16x128xf32>
    %c0_47 = arith.constant 0 : index
    %c0_48 = arith.constant 0 : index
    %58 = vector.load %arg13[%c0_47, %c0_48] : memref<16x128xf32, #tpu.memory_space<vmem>>, vector<16x128xf32>
    tpu.vector_store %arg13[%c0_47, %c0_48], %57 {strides = array<i32>} : memref<16x128xf32, #tpu.memory_space<vmem>>, vector<16x128xf32>,
    return
  }
}

</mosaic_0001>

<llo_original>
// kernel: tpu_custom_call.1
$region0: #{tpu_custom_call.1}
  #allocation0 [shape = 'u32[]', space=smem, size = 0x4, offset = 0x4, fixed_abs, tag = 'smem constant byte address 0x4 - core index']
  #allocation1 [shape = 'u32[144,128]{1,0:T(1,128)}', space=vmem, size = 0x12000, scoped, tag = 'internal scratch']
  #allocation2 [shape = 'bf16[32,128]{1,0:T(8,128)(2,1)}', space=vmem, size = 0x2000, scoped, tag = 'scratch operand']
  %s0 = inlined_call_operand.vmem [shape: bf16[16,16], index: 0, kind: input, shape index: {}]
  %s1 = inlined_call_operand.vmem [shape: bf16[16,8], index: 1, kind: input, shape index: {}]
  %s2 = inlined_call_operand.hbm [shape: bf16[16,32], index: 2, kind: input, shape index: {}]
  %s3 = inlined_call_operand.vmem [shape: bf16[16,16], index: 3, kind: input, shape index: {}]
  %s4 = inlined_call_operand.hbm [shape: bf16[16,384], index: 4, kind: input, shape index: {}]
  %s5 = inlined_call_operand.hbm [shape: bf16[8,256], index: 5, kind: input, shape index: {}]
  %s6 = inlined_call_operand.vmem [shape: f32[1,128], index: 6, kind: input, shape index: {}]
  %s7 = inlined_call_operand.vmem [shape: f32[1,128], index: 7, kind: input, shape index: {}]
  %s8 = inlined_call_operand.hbm [shape: bf16[128,256], index: 8, kind: input, shape index: {}]
  %s9 = inlined_call_operand.hbm [shape: bf16[128,128], index: 9, kind: input, shape index: {}]
  %s10 = inlined_call_operand.vmem [shape: f32[1,128], index: 10, kind: input, shape index: {}]
  %s11 = inlined_call_operand.hbm [shape: bf16[128,128], index: 11, kind: input, shape index: {}]
  %s12 = inlined_call_operand.vmem [shape: f32[1,128], index: 12, kind: input, shape index: {}]
  %s13 = inlined_call_operand.hbm [shape: f32[16,128], index: 13, kind: output, shape index: {}]
  %s14 = sld [smem:[#allocation0]]
  $region86: #{tpu_custom_call.1} parent=0
    _
  %s16 = ssub.s32 1, %s14
  %s17 = scalar_select 0, %s16, %s14
  $region1: #{tpu_custom_call.1} parent=0
    #allocation3 [shape = 'u8[4096]{0}', space=vmem, size = 0x1000, scoped, tag = 'input window, operand 2, single buffered']
    #allocation4 [shape = 's32[1]{0}', space=sflag, size = 0x4, scoped, tag = 'scoped memory for tpu_custom_call.1']
    #allocation5 [shape = 's32[1]{0}', space=sflag, size = 0x4, scoped, tag = 'scoped memory for tpu_custom_call.1']
    #allocation6 [shape = 'u8[12288]{0}', space=vmem, size = 0x3000, scoped, tag = 'input window, operand 4, single buffered']
    #allocation7 [shape = 's32[1]{0}', space=sflag, size = 0x4, scoped, tag = 'scoped memory for tpu_custom_call.1']
    #allocation8 [shape = 'u8[4096]{0}', space=vmem, size = 0x1000, scoped, tag = 'input window, operand 5, single buffered']
    #allocation9 [shape = 'u8[65536]{0}', space=vmem, size = 0x10000, scoped, tag = 'input window, operand 8, single buffered']
    #allocation10 [shape = 's32[1]{0}', space=sflag, size = 0x4, scoped, tag = 'scoped memory for tpu_custom_call.1']
    #allocation11 [shape = 'u8[32768]{0}', space=vmem, size = 0x8000, scoped, tag = 'input window, operand 9, single buffered']
    #allocation12 [shape = 'u8[32768]{0}', space=vmem, size = 0x8000, scoped, tag = 'input window, operand 11, single buffered']
    #allocation13 [shape = 's32[1]{0}', space=sflag, size = 0x4, scoped, tag = 'scoped memory for tpu_custom_call.1']
    #allocation14 [shape = 'u8[8192]{0}', space=vmem, size = 0x2000, scoped, tag = 'output window, operand 0, single buffered']
    %18 = vsyncpa [#allocation4], 0
    %19 = vsyncpa [#allocation7], 0
    %20 = vsyncpa [#allocation10], 0
    %21 = vsyncpa [#allocation13], 0
    %22 = vsyncpa [#allocation5], 0
    // Predicated region
    $region2: #{tpu_custom_call.1} parent=1 // pred_check
      _
    $region3: #{tpu_custom_call.1} parent=1 // pred_check_branch
      %24 = sbr.rel (0) target = $region5
    $region4: #{tpu_custom_call.1} parent=1 // pred_region
      _
    $region5: #{tpu_custom_call.1} parent=1 // pred_fallthru
      _
    // Predicated region
    $region6: #{tpu_custom_call.1} parent=1 // pred_check
      _
    $region7: #{tpu_custom_call.1} parent=1 // pred_check_branch
      %26 = sbr.rel (0) target = $region9
    $region8: #{tpu_custom_call.1} parent=1 // pred_region
      _
    $region9: #{tpu_custom_call.1} parent=1 // pred_fallthru
      _
    // Predicated region
    $region10: #{tpu_custom_call.1} parent=1 // pred_check
      _
    $region11: #{tpu_custom_call.1} parent=1 // pred_check_branch
      %28 = sbr.rel (0) target = $region13
    $region12: #{tpu_custom_call.1} parent=1 // pred_region
      %s30 = ssub.s32 128, 128
      %31 = vsyncadd [#allocation4], %s30
      %s32 = sshll.u32 [#allocation3], 4
      %s33 = int_to_ptr.vmem [resolvable:$true] %s32
      %38 = dma.hbm_to_vmem [thread:$0]  %s2, 128, %s33, [#allocation4], 64, 64, 4
    $region13: #{tpu_custom_call.1} parent=1 // pred_fallthru
      _
    // Predicated region
    $region14: #{tpu_custom_call.1} parent=1 // pred_check
      _
    $region15: #{tpu_custom_call.1} parent=1 // pred_check_branch
      %40 = sbr.rel (0) target = $region17
    $region16: #{tpu_custom_call.1} parent=1 // pred_region
      _
    $region17: #{tpu_custom_call.1} parent=1 // pred_fallthru
      _
    // Predicated region
    $region18: #{tpu_custom_call.1} parent=1 // pred_check
      _
    $region19: #{tpu_custom_call.1} parent=1 // pred_check_branch
      %42 = sbr.rel (0) target = $region21
    $region20: #{tpu_custom_call.1} parent=1 // pred_region
      %s44 = ssub.s32 384, 384
      %45 = vsyncadd [#allocation7], %s44
      %s46 = sshll.u32 [#allocation6], 4
      %s47 = int_to_ptr.vmem [resolvable:$true] %s46
      %52 = dma.hbm_to_vmem [thread:$0]  %s4, 384, %s47, [#allocation7], 192, 192, 12
    $region21: #{tpu_custom_call.1} parent=1 // pred_fallthru
      _
    // Predicated region
    $region22: #{tpu_custom_call.1} parent=1 // pred_check
      _
    $region23: #{tpu_custom_call.1} parent=1 // pred_check_branch
      %54 = sbr.rel (0) target = $region25
    $region24: #{tpu_custom_call.1} parent=1 // pred_region
      %s56 = ssub.s32 128, 128
      %57 = vsyncadd [#allocation7], %s56
      %s59 = sshll.u32 [#allocation8], 4
      %s60 = int_to_ptr.vmem [resolvable:$true] %s59
      %62 = dma.hbm_to_vmem [thread:$0]  %s5, 128, %s60, [#allocation7]
    $region25: #{tpu_custom_call.1} parent=1 // pred_fallthru
      _
    // Predicated region
    $region26: #{tpu_custom_call.1} parent=1 // pred_check
      _
    $region27: #{tpu_custom_call.1} parent=1 // pred_check_branch
      %64 = sbr.rel (0) target = $region29
    $region28: #{tpu_custom_call.1} parent=1 // pred_region
      _
    $region29: #{tpu_custom_call.1} parent=1 // pred_fallthru
      _
    // Predicated region
    $region30: #{tpu_custom_call.1} parent=1 // pred_check
      _
    $region31: #{tpu_custom_call.1} parent=1 // pred_check_branch
      %66 = sbr.rel (0) target = $region33
    $region32: #{tpu_custom_call.1} parent=1 // pred_region
      _
    $region33: #{tpu_custom_call.1} parent=1 // pred_fallthru
      _
    // Predicated region
    $region34: #{tpu_custom_call.1} parent=1 // pred_check
      _
    $region35: #{tpu_custom_call.1} parent=1 // pred_check_branch
      %68 = sbr.rel (0) target = $region37
    $region36: #{tpu_custom_call.1} parent=1 // pred_region
      %s70 = ssub.s32 2048, 2048
      %71 = vsyncadd [#allocation10], %s70
      %s72 = sshll.u32 [#allocation9], 4
      %s73 = int_to_ptr.vmem [resolvable:$true] %s72
      %78 = dma.hbm_to_vmem [thread:$0]  %s8, 2048, %s73, [#allocation10], 128, 128, 8
    $region37: #{tpu_custom_call.1} parent=1 // pred_fallthru
      _
    // Predicated region
    $region38: #{tpu_custom_call.1} parent=1 // pred_check
      _
    $region39: #{tpu_custom_call.1} parent=1 // pred_check_branch
      %80 = sbr.rel (0) target = $region41
    $region40: #{tpu_custom_call.1} parent=1 // pred_region
      %s82 = ssub.s32 1024, 1024
      %83 = vsyncadd [#allocation10], %s82
      %s84 = sshll.u32 [#allocation11], 4
      %s85 = int_to_ptr.vmem [resolvable:$true] %s84
      %90 = dma.hbm_to_vmem [thread:$0]  %s9, 1024, %s85, [#allocation10], 64, 64, 4
    $region41: #{tpu_custom_call.1} parent=1 // pred_fallthru
      _
    // Predicated region
    $region42: #{tpu_custom_call.1} parent=1 // pred_check
      _
    $region43: #{tpu_custom_call.1} parent=1 // pred_check_branch
      %92 = sbr.rel (0) target = $region45
    $region44: #{tpu_custom_call.1} parent=1 // pred_region
      _
    $region45: #{tpu_custom_call.1} parent=1 // pred_fallthru
      _
    // Predicated region
    $region46: #{tpu_custom_call.1} parent=1 // pred_check
      _
    $region47: #{tpu_custom_call.1} parent=1 // pred_check_branch
      %94 = sbr.rel (0) target = $region49
    $region48: #{tpu_custom_call.1} parent=1 // pred_region
      %s96 = ssub.s32 1024, 1024
      %97 = vsyncadd [#allocation13], %s96
      %s98 = sshll.u32 [#allocation12], 4
      %s99 = int_to_ptr.vmem [resolvable:$true] %s98
      %104 = dma.hbm_to_vmem [thread:$0]  %s11, 1024, %s99, [#allocation13], 64, 64, 4
    $region49: #{tpu_custom_call.1} parent=1 // pred_fallthru
      _
    // Predicated region
    $region50: #{tpu_custom_call.1} parent=1 // pred_check
      _
    $region51: #{tpu_custom_call.1} parent=1 // pred_check_branch
      %106 = sbr.rel (0) target = $region53
    $region52: #{tpu_custom_call.1} parent=1 // pred_region
      _
    $region53: #{tpu_custom_call.1} parent=1 // pred_fallthru
      _
    // Predicated region
    $region54: #{tpu_custom_call.1} parent=1 // pred_check
      _
    $region55: #{tpu_custom_call.1} parent=1 // pred_check_branch
      %108 = sbr.rel (0) target = $region57
    $region56: #{tpu_custom_call.1} parent=1 // pred_region
      %109 = dma.done [#allocation4], 128
    $region57: #{tpu_custom_call.1} parent=1 // pred_fallthru
      _
    // Predicated region
    $region58: #{tpu_custom_call.1} parent=1 // pred_check
      _
    $region59: #{tpu_custom_call.1} parent=1 // pred_check_branch
      %111 = sbr.rel (0) target = $region61
    $region60: #{tpu_custom_call.1} parent=1 // pred_region
      %112 = dma.done [#allocation7], 384
    $region61: #{tpu_custom_call.1} parent=1 // pred_fallthru
      _
    // Predicated region
    $region62: #{tpu_custom_call.1} parent=1 // pred_check
      _
    $region63: #{tpu_custom_call.1} parent=1 // pred_check_branch
      %114 = sbr.rel (0) target = $region65
    $region64: #{tpu_custom_call.1} parent=1 // pred_region
      %115 = dma.done [#allocation7], 128
    $region65: #{tpu_custom_call.1} parent=1 // pred_fallthru
      _
    // Predicated region
    $region66: #{tpu_custom_call.1} parent=1 // pred_check
      _
    $region67: #{tpu_custom_call.1} parent=1 // pred_check_branch
      %117 = sbr.rel (0) target = $region69
    $region68: #{tpu_custom_call.1} parent=1 // pred_region
      %118 = dma.done [#allocation10], 2048
    $region69: #{tpu_custom_call.1} parent=1 // pred_fallthru
      _
    // Predicated region
    $region70: #{tpu_custom_call.1} parent=1 // pred_check
      _
    $region71: #{tpu_custom_call.1} parent=1 // pred_check_branch
      %120 = sbr.rel (0) target = $region73
    $region72: #{tpu_custom_call.1} parent=1 // pred_region
      %121 = dma.done [#allocation10], 1024
    $region73: #{tpu_custom_call.1} parent=1 // pred_fallthru
      _
    // Predicated region
    $region74: #{tpu_custom_call.1} parent=1 // pred_check
      _
    $region75: #{tpu_custom_call.1} parent=1 // pred_check_branch
      %123 = sbr.rel (0) target = $region77
    $region76: #{tpu_custom_call.1} parent=1 // pred_region
      %124 = dma.done [#allocation13], 1024
    $region77: #{tpu_custom_call.1} parent=1 // pred_fallthru
      _
    %v126 = vld [vmem:[%s0] sm:$0xf]
    %v127 = vld [vmem:[%s0 + $0x4] sm:$0xf]
    %v128 = vld [vmem:[#allocation6] sm:$0xff]
    %v129 = vld [vmem:[#allocation6 + $0x8] sm:$0xf]
    %v130 = vld [vmem:[#allocation6 + $0xc] sm:$0xff]
    %v131 = vld [vmem:[#allocation6 + $0x14] sm:$0xf]
    %v134 = vunpack.c.l.b16 %v126
    %v135 = vunpack.c.l.b16 %v127
    %v136 = vpack.c.b16 %v135, %v134
    %v141 = vunpack.c.l.b16 %v128
    %v142 = vunpack.c.h.b16 %v128
    %v143 = vunpack.c.l.b16 %v129
    %v144 = vunpack.c.l.b16 %v130
    %v145 = vunpack.c.h.b16 %v130
    %v146 = vunpack.c.l.b16 %v131
    %v147 = vpack.c.b16 %v144, %v141
    %v148 = vpack.c.b16 %v145, %v142
    %v149 = vpack.c.b16 %v146, %v143
    %vm153 = vcmask 130048
    %v155 = vsel %vm153, %v136, 0
    %157 = vmatprep.subr.bf16.mxu0 0
    %158 = vmatpush1.bf16.msra.mxu0 0
    %159 = vmatprep.subr.bf16.mxu0 0
    %160 = vmatpush1.bf16.msra.mxu0 0
    %161 = vmatprep.subr.bf16.mxu0 0
    %162 = vmatpush1.bf16.msra.mxu0 0
    %163 = vmatprep.subr.bf16.mxu0 0
    %164 = vmatpush1.bf16.msra.mxu0 0
    %165 = vmatprep.subr.bf16.mxu0 0
    %166 = vmatpush1.bf16.msra.mxu0 0
    %167 = vmatprep.subr.bf16.mxu0 0
    %168 = vmatpush1.bf16.msra.mxu0 0
    %169 = vmatprep.subr.bf16.mxu0 0
    %170 = vmatpush1.bf16.msra.mxu0 0
    %171 = vmatprep.subr.bf16.mxu0 %v148
    %172 = vmatpush1.bf16.msra.mxu0 %v147
    %173 = vmatprep.subr.bf16.mxu0 0
    %174 = vmatpush2.bf16.msra.mxu0 0
    %175 = vmatprep.subr.bf16.mxu0 0
    %176 = vmatpush2.bf16.msra.mxu0 0
    %177 = vmatprep.subr.bf16.mxu0 0
    %178 = vmatpush2.bf16.msra.mxu0 0
    %179 = vmatprep.subr.bf16.mxu0 0
    %180 = vmatpush2.bf16.msra.mxu0 0
    %181 = vmatprep.subr.bf16.mxu0 0
    %182 = vmatpush2.bf16.msra.mxu0 0
    %183 = vmatprep.subr.bf16.mxu0 0
    %184 = vmatpush2.bf16.msra.mxu0 0
    %185 = vmatprep.subr.bf16.mxu0 0
    %186 = vmatpush2.bf16.msra.mxu0 0
    %187 = vmatprep.subr.bf16.mxu0 0
    %188 = vmatpush2.bf16.msra.mxu0 0
    %189 = vmatprep.mubr.bf16.mxu0 0
    %190 = vmatmul.mubr.bf16.gmra.mxu0 %v155
    %v191 = vpop.f32.mrf.mxu0
    %v192 = vadd.f32 0.0, %v191
    %v193 = vpop.f32.mrf.mxu0
    %v194 = vadd.f32 0.0, %v193
    %v195 = vpop.f32.mrf.mxu0
    %v196 = vadd.f32 0.0, %v195
    %v197 = vpop.f32.mrf.mxu0
    %v198 = vadd.f32 0.0, %v197
    %199 = vdwg.mxu0
    %200 = vmatprep.subr.bf16.mxu0 0
    %201 = vmatpush1.bf16.msra.mxu0 0
    %202 = vmatprep.subr.bf16.mxu0 0
    %203 = vmatpush1.bf16.msra.mxu0 0
    %204 = vmatprep.subr.bf16.mxu0 0
    %205 = vmatpush1.bf16.msra.mxu0 0
    %206 = vmatprep.subr.bf16.mxu0 0
    %207 = vmatpush1.bf16.msra.mxu0 0
    %208 = vmatprep.subr.bf16.mxu0 0
    %209 = vmatpush1.bf16.msra.mxu0 0
    %210 = vmatprep.subr.bf16.mxu0 0
    %211 = vmatpush1.bf16.msra.mxu0 0
    %212 = vmatprep.subr.bf16.mxu0 0
    %213 = vmatpush1.bf16.msra.mxu0 0
    %214 = vmatprep.subr.bf16.mxu0 0
    %215 = vmatpush1.bf16.msra.mxu0 %v149
    %216 = vmatprep.subr.bf16.mxu0 0
    %217 = vmatpush2.bf16.msra.mxu0 0
    %218 = vmatprep.subr.bf16.mxu0 0
    %219 = vmatpush2.bf16.msra.mxu0 0
    %220 = vmatprep.subr.bf16.mxu0 0
    %221 = vmatpush2.bf16.msra.mxu0 0
    %222 = vmatprep.subr.bf16.mxu0 0
    %223 = vmatpush2.bf16.msra.mxu0 0
    %224 = vmatprep.subr.bf16.mxu0 0
    %225 = vmatpush2.bf16.msra.mxu0 0
    %226 = vmatprep.subr.bf16.mxu0 0
    %227 = vmatpush2.bf16.msra.mxu0 0
    %228 = vmatprep.subr.bf16.mxu0 0
    %229 = vmatpush2.bf16.msra.mxu0 0
    %230 = vmatprep.subr.bf16.mxu0 0
    %231 = vmatpush2.bf16.msra.mxu0 0
    %232 = vmatprep.mubr.bf16.mxu0 0
    %233 = vmatmul.mubr.bf16.gmra.mxu0 %v155
    %v234 = vpop.f32.mrf.mxu0
    %v235 = vadd.f32 0.0, %v234
    %v236 = vpop.f32.mrf.mxu0
    %v237 = vpop.f32.mrf.mxu0
    %v238 = vadd.f32 0.0, %v237
    %v239 = vpop.f32.mrf.mxu0
    %240 = vdwg.mxu0
    %v241 = vld [vmem:[%s1] sm:$0xf]
    %v242 = vld [vmem:[%s1 + $0x4] sm:$0xf]
    %v243 = vld [vmem:[#allocation8] sm:$0xff]
    %v246 = vunpack.c.l.b16 %v241
    %v247 = vunpack.c.l.b16 %v242
    %v248 = vpack.c.b16 %v247, %v246
    %v250 = vunpack.c.l.b16 %v243
    %v251 = vunpack.c.h.b16 %v243
    %v252 = vpack.c.b16 %v250, %v250
    %v253 = vpack.c.b16 %v251, %v251
    %vm254 = vcmask 64512
    %v256 = vsel %vm254, %v248, 0
    %vm258 = vcmask 1043456
    %v260 = vsel %vm258, %v252, 0
    %v263 = vsel %vm258, %v253, 0
    %265 = vmatprep.subr.bf16.mxu0 0
    %266 = vmatpush1.bf16.msra.mxu0 0
    %267 = vmatprep.subr.bf16.mxu0 0
    %268 = vmatpush1.bf16.msra.mxu0 0
    %269 = vmatprep.subr.bf16.mxu0 0
    %270 = vmatpush1.bf16.msra.mxu0 0
    %271 = vmatprep.subr.bf16.mxu0 0
    %272 = vmatpush1.bf16.msra.mxu0 0
    %273 = vmatprep.subr.bf16.mxu0 0
    %274 = vmatpush1.bf16.msra.mxu0 0
    %275 = vmatprep.subr.bf16.mxu0 0
    %276 = vmatpush1.bf16.msra.mxu0 0
    %277 = vmatprep.subr.bf16.mxu0 0
    %278 = vmatpush1.bf16.msra.mxu0 0
    %279 = vmatprep.subr.bf16.mxu0 %v263
    %280 = vmatpush1.bf16.msra.mxu0 %v260
    %281 = vmatprep.subr.bf16.mxu0 0
    %282 = vmatpush2.bf16.msra.mxu0 0
    %283 = vmatprep.subr.bf16.mxu0 0
    %284 = vmatpush2.bf16.msra.mxu0 0
    %285 = vmatprep.subr.bf16.mxu0 0
    %286 = vmatpush2.bf16.msra.mxu0 0
    %287 = vmatprep.subr.bf16.mxu0 0
    %288 = vmatpush2.bf16.msra.mxu0 0
    %289 = vmatprep.subr.bf16.mxu0 0
    %290 = vmatpush2.bf16.msra.mxu0 0
    %291 = vmatprep.subr.bf16.mxu0 0
    %292 = vmatpush2.bf16.msra.mxu0 0
    %293 = vmatprep.subr.bf16.mxu0 0
    %294 = vmatpush2.bf16.msra.mxu0 0
    %295 = vmatprep.subr.bf16.mxu0 0
    %296 = vmatpush2.bf16.msra.mxu0 0
    %297 = vmatprep.mubr.bf16.mxu0 0
    %298 = vmatmul.mubr.bf16.gmra.mxu0 %v256
    %v299 = vpop.f32.mrf.mxu0
    %v300 = vadd.f32 0.0, %v299
    %v301 = vpop.f32.mrf.mxu0
    %v302 = vadd.f32 0.0, %v301
    %v303 = vpop.f32.mrf.mxu0
    %v304 = vadd.f32 0.0, %v303
    %v305 = vpop.f32.mrf.mxu0
    %v306 = vadd.f32 0.0, %v305
    %307 = vdwg.mxu0
    %v308 = vpack.c.bf16 %v196, %v192
    %v310 = vunpack.c.l.b16 %v308
    %v311 = vunpack.c.h.b16 %v308
    %v312 = vpack.c.b16 %v310, %v310
    %v313 = vpack.c.b16 %v311, %v311
    %316 = vst [vmem:[#allocation2] sm:$0xf] %v312
    %317 = vst [vmem:[#allocation2 + $0x4] sm:$0xf] %v313
    %v318 = vpack.c.bf16 %v304, %v300
    %v320 = vunpack.c.l.b16 %v318
    %v321 = vunpack.c.h.b16 %v318
    %v322 = vpack.c.b16 %v320, %v320
    %v323 = vpack.c.b16 %v321, %v321
    %326 = vst [vmem:[#allocation2 + $0x8] sm:$0xf] %v322
    %327 = vst [vmem:[#allocation2 + $0xc] sm:$0xf] %v323
    %v328 = vld [vmem:[#allocation3] sm:$0xf]
    %v329 = vld [vmem:[#allocation3 + $0x4] sm:$0xf]
    %v330 = vld [vmem:[#allocation2] sm:$0xf]
    %v331 = vld [vmem:[#allocation2 + $0x4] sm:$0xf]
    %v332 = vld [vmem:[#allocation2 + $0x8] sm:$0xf]
    %v333 = vld [vmem:[#allocation2 + $0xc] sm:$0xf]
    %v336 = vunpack.c.l.b16 %v328
    %v337 = vunpack.c.l.b16 %v329
    %v338 = vpack.c.b16 %v337, %v336
    %v343 = vunpack.c.l.b16 %v330
    %v344 = vunpack.c.l.b16 %v331
    %v345 = vunpack.c.l.b16 %v332
    %v346 = vunpack.c.l.b16 %v333
    %v347 = vpack.c.b16 %v344, %v343
    %v348 = vpack.c.b16 %v346, %v345
    %vm351 = vcmask 261120
    %v353 = vsel %vm351, %v338, 0
    %355 = vmatprep.subr.bf16.mxu0 0
    %356 = vmatpush1.bf16.msra.mxu0 0
    %357 = vmatprep.subr.bf16.mxu0 0
    %358 = vmatpush1.bf16.msra.mxu0 0
    %359 = vmatprep.subr.bf16.mxu0 0
    %360 = vmatpush1.bf16.msra.mxu0 0
    %361 = vmatprep.subr.bf16.mxu0 0
    %362 = vmatpush1.bf16.msra.mxu0 0
    %363 = vmatprep.subr.bf16.mxu0 0
    %364 = vmatpush1.bf16.msra.mxu0 0
    %365 = vmatprep.subr.bf16.mxu0 0
    %366 = vmatpush1.bf16.msra.mxu0 0
    %367 = vmatprep.subr.bf16.mxu0 0
    %368 = vmatpush1.bf16.msra.mxu0 %v348
    %369 = vmatprep.subr.bf16.mxu0 0
    %370 = vmatpush1.bf16.msra.mxu0 %v347
    %371 = vmatprep.subr.bf16.mxu0 0
    %372 = vmatpush2.bf16.msra.mxu0 0
    %373 = vmatprep.subr.bf16.mxu0 0
    %374 = vmatpush2.bf16.msra.mxu0 0
    %375 = vmatprep.subr.bf16.mxu0 0
    %376 = vmatpush2.bf16.msra.mxu0 0
    %377 = vmatprep.subr.bf16.mxu0 0
    %378 = vmatpush2.bf16.msra.mxu0 0
    %379 = vmatprep.subr.bf16.mxu0 0
    %380 = vmatpush2.bf16.msra.mxu0 0
    %381 = vmatprep.subr.bf16.mxu0 0
    %382 = vmatpush2.bf16.msra.mxu0 0
    %383 = vmatprep.subr.bf16.mxu0 0
    %384 = vmatpush2.bf16.msra.mxu0 0
    %385 = vmatprep.subr.bf16.mxu0 0
    %386 = vmatpush2.bf16.msra.mxu0 0
    %387 = vmatprep.mubr.bf16.mxu0 0
    %388 = vmatmul.mubr.bf16.gmra.mxu0 %v353
    %v389 = vpop.f32.mrf.mxu0
    %v390 = vadd.f32 %v235, %v389
    %v391 = vpop.f32.mrf.mxu0
    %v392 = vpop.f32.mrf.mxu0
    %v393 = vadd.f32 %v238, %v392
    %v394 = vpop.f32.mrf.mxu0
    %395 = vdwg.mxu0
    %v396 = vld [vmem:[%s6] sm:$0x1]
    %v398 = vlaneseq
    %v399 = vshrl.u32 %v398, 7
    %v400 = vsub.s32 0, %v399
    %v401 = vrot.slane %v396, %v400
    %v403 = vadd.f32 %v390, %v401
    %v404 = vadd.f32 %v393, %v401
    %v405 = vmax.f32 %v403, 0.0
    %v406 = vmax.f32 %v404, 0.0
    %v407 = vld [vmem:[%s3] sm:$0xf]
    %v408 = vld [vmem:[%s3 + $0x4] sm:$0xf]
    %v409 = vpack.c.bf16 %v198, %v194
    %v412 = vunpack.c.l.b16 %v407
    %v413 = vunpack.c.l.b16 %v408
    %v414 = vpack.c.b16 %v413, %v412
    %v416 = vsel %vm153, %v414, 0
    %418 = vmatprep.subr.bf16.mxu0 0
    %419 = vmatpush1.bf16.msra.mxu0 0
    %420 = vmatprep.subr.bf16.mxu0 0
    %421 = vmatpush1.bf16.msra.mxu0 0
    %422 = vmatprep.subr.bf16.mxu0 0
    %423 = vmatpush1.bf16.msra.mxu0 0
    %424 = vmatprep.subr.bf16.mxu0 0
    %425 = vmatpush1.bf16.msra.mxu0 0
    %426 = vmatprep.subr.bf16.mxu0 0
    %427 = vmatpush1.bf16.msra.mxu0 0
    %428 = vmatprep.subr.bf16.mxu0 0
    %429 = vmatpush1.bf16.msra.mxu0 0
    %430 = vmatprep.subr.bf16.mxu0 0
    %431 = vmatpush1.bf16.msra.mxu0 0
    %432 = vmatprep.subr.bf16.mxu0 0
    %433 = vmatpush1.bf16.msra.mxu0 %v409
    %434 = vmatprep.subr.bf16.mxu0 0
    %435 = vmatpush2.bf16.msra.mxu0 0
    %436 = vmatprep.subr.bf16.mxu0 0
    %437 = vmatpush2.bf16.msra.mxu0 0
    %438 = vmatprep.subr.bf16.mxu0 0
    %439 = vmatpush2.bf16.msra.mxu0 0
    %440 = vmatprep.subr.bf16.mxu0 0
    %441 = vmatpush2.bf16.msra.mxu0 0
    %442 = vmatprep.subr.bf16.mxu0 0
    %443 = vmatpush2.bf16.msra.mxu0 0
    %444 = vmatprep.subr.bf16.mxu0 0
    %445 = vmatpush2.bf16.msra.mxu0 0
    %446 = vmatprep.subr.bf16.mxu0 0
    %447 = vmatpush2.bf16.msra.mxu0 0
    %448 = vmatprep.subr.bf16.mxu0 0
    %449 = vmatpush2.bf16.msra.mxu0 0
    %450 = vmatprep.mubr.bf16.mxu0 0
    %451 = vmatmul.mubr.bf16.gmra.mxu0 %v416
    %v452 = vpop.f32.mrf.mxu0
    %v453 = vadd.f32 %v302, %v452
    %v454 = vpop.f32.mrf.mxu0
    %v455 = vpop.f32.mrf.mxu0
    %v456 = vadd.f32 %v306, %v455
    %v457 = vpop.f32.mrf.mxu0
    %458 = vdwg.mxu0
    %v459 = vld [vmem:[%s7] sm:$0x1]
    %v461 = vlaneseq
    %v462 = vshrl.u32 %v461, 7
    %v463 = vsub.s32 0, %v462
    %v464 = vrot.slane %v459, %v463
    %v466 = vadd.f32 %v453, %v464
    %v467 = vadd.f32 %v456, %v464
    %v468 = vmax.f32 %v466, 0.0
    %v469 = vmax.f32 %v467, 0.0
    %v470 = vpack.c.bf16 %v406, %v405
    %v471 = vld [vmem:[#allocation9] sm:$0xff]
    %v472 = vld [vmem:[#allocation9 + $0x8] sm:$0xff]
    %v473 = vld [vmem:[#allocation9 + $0x10] sm:$0xff]
    %v474 = vld [vmem:[#allocation9 + $0x18] sm:$0xff]
    %v475 = vld [vmem:[#allocation9 + $0x20] sm:$0xff]
    %v476 = vld [vmem:[#allocation9 + $0x28] sm:$0xff]
    %v477 = vld [vmem:[#allocation9 + $0x30] sm:$0xff]
    %v478 = vld [vmem:[#allocation9 + $0x38] sm:$0xff]
    %v479 = vld [vmem:[#allocation9 + $0x40] sm:$0xff]
    %v480 = vld [vmem:[#allocation9 + $0x48] sm:$0xff]
    %v481 = vld [vmem:[#allocation9 + $0x50] sm:$0xff]
    %v482 = vld [vmem:[#allocation9 + $0x58] sm:$0xff]
    %v483 = vld [vmem:[#allocation9 + $0x60] sm:$0xff]
    %v484 = vld [vmem:[#allocation9 + $0x68] sm:$0xff]
    %v485 = vld [vmem:[#allocation9 + $0x70] sm:$0xff]
    %v486 = vld [vmem:[#allocation9 + $0x78] sm:$0xff]
    %v503 = vunpack.c.l.b16 %v471
    %v504 = vunpack.c.h.b16 %v471
    %v505 = vunpack.c.l.b16 %v472
    %v506 = vunpack.c.h.b16 %v472
    %v507 = vunpack.c.l.b16 %v473
    %v508 = vunpack.c.h.b16 %v473
    %v509 = vunpack.c.l.b16 %v474
    %v510 = vunpack.c.h.b16 %v474
    %v511 = vunpack.c.l.b16 %v475
    %v512 = vunpack.c.h.b16 %v475
    %v513 = vunpack.c.l.b16 %v476
    %v514 = vunpack.c.h.b16 %v476
    %v515 = vunpack.c.l.b16 %v477
    %v516 = vunpack.c.h.b16 %v477
    %v517 = vunpack.c.l.b16 %v478
    %v518 = vunpack.c.h.b16 %v478
    %v519 = vunpack.c.l.b16 %v479
    %v520 = vunpack.c.h.b16 %v479
    %v521 = vunpack.c.l.b16 %v480
    %v522 = vunpack.c.h.b16 %v480
    %v523 = vunpack.c.l.b16 %v481
    %v524 = vunpack.c.h.b16 %v481
    %v525 = vunpack.c.l.b16 %v482
    %v526 = vunpack.c.h.b16 %v482
    %v527 = vunpack.c.l.b16 %v483
    %v528 = vunpack.c.h.b16 %v483
    %v529 = vunpack.c.l.b16 %v484
    %v530 = vunpack.c.h.b16 %v484
    %v531 = vunpack.c.l.b16 %v485
    %v532 = vunpack.c.h.b16 %v485
    %v533 = vunpack.c.l.b16 %v486
    %v534 = vunpack.c.h.b16 %v486
    %v535 = vpack.c.b16 %v505, %v503
    %v536 = vpack.c.b16 %v506, %v504
    %v537 = vpack.c.b16 %v509, %v507
    %v538 = vpack.c.b16 %v510, %v508
    %v539 = vpack.c.b16 %v513, %v511
    %v540 = vpack.c.b16 %v514, %v512
    %v541 = vpack.c.b16 %v517, %v515
    %v542 = vpack.c.b16 %v518, %v516
    %v543 = vpack.c.b16 %v521, %v519
    %v544 = vpack.c.b16 %v522, %v520
    %v545 = vpack.c.b16 %v525, %v523
    %v546 = vpack.c.b16 %v526, %v524
    %v547 = vpack.c.b16 %v529, %v527
    %v548 = vpack.c.b16 %v530, %v528
    %v549 = vpack.c.b16 %v533, %v531
    %v550 = vpack.c.b16 %v534, %v532
    %567 = vmatprep.subr.bf16.mxu0 %v550
    %568 = vmatpush1.bf16.msra.mxu0 %v549
    %569 = vmatprep.subr.bf16.mxu0 %v548
    %570 = vmatpush1.bf16.msra.mxu0 %v547
    %571 = vmatprep.subr.bf16.mxu0 %v546
    %572 = vmatpush1.bf16.msra.mxu0 %v545
    %573 = vmatprep.subr.bf16.mxu0 %v544
    %574 = vmatpush1.bf16.msra.mxu0 %v543
    %575 = vmatprep.subr.bf16.mxu0 %v542
    %576 = vmatpush1.bf16.msra.mxu0 %v541
    %577 = vmatprep.subr.bf16.mxu0 %v540
    %578 = vmatpush1.bf16.msra.mxu0 %v539
    %579 = vmatprep.subr.bf16.mxu0 %v538
    %580 = vmatpush1.bf16.msra.mxu0 %v537
    %581 = vmatprep.subr.bf16.mxu0 %v536
    %582 = vmatpush1.bf16.msra.mxu0 %v535
    %583 = vmatprep.subr.bf16.mxu0 0
    %584 = vmatpush2.bf16.msra.mxu0 0
    %585 = vmatprep.subr.bf16.mxu0 0
    %586 = vmatpush2.bf16.msra.mxu0 0
    %587 = vmatprep.subr.bf16.mxu0 0
    %588 = vmatpush2.bf16.msra.mxu0 0
    %589 = vmatprep.subr.bf16.mxu0 0
    %590 = vmatpush2.bf16.msra.mxu0 0
    %591 = vmatprep.subr.bf16.mxu0 0
    %592 = vmatpush2.bf16.msra.mxu0 0
    %593 = vmatprep.subr.bf16.mxu0 0
    %594 = vmatpush2.bf16.msra.mxu0 0
    %595 = vmatprep.subr.bf16.mxu0 0
    %596 = vmatpush2.bf16.msra.mxu0 0
    %597 = vmatprep.subr.bf16.mxu0 0
    %598 = vmatpush2.bf16.msra.mxu0 0
    %599 = vmatprep.mubr.bf16.mxu0 0
    %600 = vmatmul.mubr.bf16.gmra.mxu0 %v470
    %v601 = vpop.f32.mrf.mxu0
    %v602 = vadd.f32 0.0, %v601
    %v603 = vpop.f32.mrf.mxu0
    %v604 = vadd.f32 0.0, %v603
    %v605 = vpop.f32.mrf.mxu0
    %v606 = vadd.f32 0.0, %v605
    %v607 = vpop.f32.mrf.mxu0
    %v608 = vadd.f32 0.0, %v607
    %609 = vdwg.mxu0
    %v610 = vpack.c.bf16 %v469, %v468
    %v611 = vld [vmem:[#allocation11] sm:$0xf]
    %v612 = vld [vmem:[#allocation11 + $0x4] sm:$0xf]
    %v613 = vld [vmem:[#allocation11 + $0x8] sm:$0xf]
    %v614 = vld [vmem:[#allocation11 + $0xc] sm:$0xf]
    %v615 = vld [vmem:[#allocation11 + $0x10] sm:$0xf]
    %v616 = vld [vmem:[#allocation11 + $0x14] sm:$0xf]
    %v617 = vld [vmem:[#allocation11 + $0x18] sm:$0xf]
    %v618 = vld [vmem:[#allocation11 + $0x1c] sm:$0xf]
    %v619 = vld [vmem:[#allocation11 + $0x20] sm:$0xf]
    %v620 = vld [vmem:[#allocation11 + $0x24] sm:$0xf]
    %v621 = vld [vmem:[#allocation11 + $0x28] sm:$0xf]
    %v622 = vld [vmem:[#allocation11 + $0x2c] sm:$0xf]
    %v623 = vld [vmem:[#allocation11 + $0x30] sm:$0xf]
    %v624 = vld [vmem:[#allocation11 + $0x34] sm:$0xf]
    %v625 = vld [vmem:[#allocation11 + $0x38] sm:$0xf]
    %v626 = vld [vmem:[#allocation11 + $0x3c] sm:$0xf]
    %v643 = vunpack.c.l.b16 %v611
    %v644 = vunpack.c.l.b16 %v612
    %v645 = vunpack.c.l.b16 %v613
    %v646 = vunpack.c.l.b16 %v614
    %v647 = vunpack.c.l.b16 %v615
    %v648 = vunpack.c.l.b16 %v616
    %v649 = vunpack.c.l.b16 %v617
    %v650 = vunpack.c.l.b16 %v618
    %v651 = vunpack.c.l.b16 %v619
    %v652 = vunpack.c.l.b16 %v620
    %v653 = vunpack.c.l.b16 %v621
    %v654 = vunpack.c.l.b16 %v622
    %v655 = vunpack.c.l.b16 %v623
    %v656 = vunpack.c.l.b16 %v624
    %v657 = vunpack.c.l.b16 %v625
    %v658 = vunpack.c.l.b16 %v626
    %v659 = vpack.c.b16 %v644, %v643
    %v660 = vpack.c.b16 %v646, %v645
    %v661 = vpack.c.b16 %v648, %v647
    %v662 = vpack.c.b16 %v650, %v649
    %v663 = vpack.c.b16 %v652, %v651
    %v664 = vpack.c.b16 %v654, %v653
    %v665 = vpack.c.b16 %v656, %v655
    %v666 = vpack.c.b16 %v658, %v657
    %675 = vmatprep.subr.bf16.mxu0 0
    %676 = vmatpush1.bf16.msra.mxu0 %v666
    %677 = vmatprep.subr.bf16.mxu0 0
    %678 = vmatpush1.bf16.msra.mxu0 %v665
    %679 = vmatprep.subr.bf16.mxu0 0
    %680 = vmatpush1.bf16.msra.mxu0 %v664
    %681 = vmatprep.subr.bf16.mxu0 0
    %682 = vmatpush1.bf16.msra.mxu0 %v663
    %683 = vmatprep.subr.bf16.mxu0 0
    %684 = vmatpush1.bf16.msra.mxu0 %v662
    %685 = vmatprep.subr.bf16.mxu0 0
    %686 = vmatpush1.bf16.msra.mxu0 %v661
    %687 = vmatprep.subr.bf16.mxu0 0
    %688 = vmatpush1.bf16.msra.mxu0 %v660
    %689 = vmatprep.subr.bf16.mxu0 0
    %690 = vmatpush1.bf16.msra.mxu0 %v659
    %691 = vmatprep.subr.bf16.mxu0 0
    %692 = vmatpush2.bf16.msra.mxu0 0
    %693 = vmatprep.subr.bf16.mxu0 0
    %694 = vmatpush2.bf16.msra.mxu0 0
    %695 = vmatprep.subr.bf16.mxu0 0
    %696 = vmatpush2.bf16.msra.mxu0 0
    %697 = vmatprep.subr.bf16.mxu0 0
    %698 = vmatpush2.bf16.msra.mxu0 0
    %699 = vmatprep.subr.bf16.mxu0 0
    %700 = vmatpush2.bf16.msra.mxu0 0
    %701 = vmatprep.subr.bf16.mxu0 0
    %702 = vmatpush2.bf16.msra.mxu0 0
    %703 = vmatprep.subr.bf16.mxu0 0
    %704 = vmatpush2.bf16.msra.mxu0 0
    %705 = vmatprep.subr.bf16.mxu0 0
    %706 = vmatpush2.bf16.msra.mxu0 0
    %707 = vmatprep.mubr.bf16.mxu0 0
    %708 = vmatmul.mubr.bf16.gmra.mxu0 %v610
    %v709 = vpop.f32.mrf.mxu0
    %v710 = vadd.f32 0.0, %v709
    %v711 = vpop.f32.mrf.mxu0
    %v712 = vpop.f32.mrf.mxu0
    %v713 = vadd.f32 0.0, %v712
    %v714 = vpop.f32.mrf.mxu0
    %715 = vdwg.mxu0
    %v716 = vpack.c.bf16 %v606, %v602
    %v718 = vunpack.c.l.b16 %v716
    %v719 = vunpack.c.h.b16 %v716
    %v720 = vpack.c.b16 %v718, %v718
    %v721 = vpack.c.b16 %v719, %v719
    %724 = vst [vmem:[#allocation2] sm:$0xf] %v720
    %725 = vst [vmem:[#allocation2 + $0x4] sm:$0xf] %v721
    %v726 = vpack.c.bf16 %v713, %v710
    %v728 = vunpack.c.l.b16 %v726
    %v729 = vunpack.c.h.b16 %v726
    %v730 = vpack.c.b16 %v728, %v728
    %v731 = vpack.c.b16 %v729, %v729
    %734 = vst [vmem:[#allocation2 + $0x8] sm:$0xf] %v730
    %735 = vst [vmem:[#allocation2 + $0xc] sm:$0xf] %v731
    %v736 = vld [vmem:[#allocation3] sm:$0xf]
    %v737 = vld [vmem:[#allocation3 + $0x4] sm:$0xf]
    %v738 = vld [vmem:[#allocation2] sm:$0xf]
    %v739 = vld [vmem:[#allocation2 + $0x4] sm:$0xf]
    %v740 = vld [vmem:[#allocation2 + $0x8] sm:$0xf]
    %v741 = vld [vmem:[#allocation2 + $0xc] sm:$0xf]
    %v744 = vunpack.c.l.b16 %v736
    %v745 = vunpack.c.l.b16 %v737
    %v746 = vpack.c.b16 %v745, %v744
    %v751 = vunpack.c.l.b16 %v738
    %v752 = vunpack.c.l.b16 %v739
    %v753 = vunpack.c.l.b16 %v740
    %v754 = vunpack.c.l.b16 %v741
    %v755 = vpack.c.b16 %v752, %v751
    %v756 = vpack.c.b16 %v754, %v753
    %v760 = vsel %vm351, %v746, 0
    %762 = vmatprep.subr.bf16.mxu0 0
    %763 = vmatpush1.bf16.msra.mxu0 0
    %764 = vmatprep.subr.bf16.mxu0 0
    %765 = vmatpush1.bf16.msra.mxu0 0
    %766 = vmatprep.subr.bf16.mxu0 0
    %767 = vmatpush1.bf16.msra.mxu0 0
    %768 = vmatprep.subr.bf16.mxu0 0
    %769 = vmatpush1.bf16.msra.mxu0 0
    %770 = vmatprep.subr.bf16.mxu0 0
    %771 = vmatpush1.bf16.msra.mxu0 0
    %772 = vmatprep.subr.bf16.mxu0 0
    %773 = vmatpush1.bf16.msra.mxu0 0
    %774 = vmatprep.subr.bf16.mxu0 0
    %775 = vmatpush1.bf16.msra.mxu0 %v756
    %776 = vmatprep.subr.bf16.mxu0 0
    %777 = vmatpush1.bf16.msra.mxu0 %v755
    %778 = vmatprep.subr.bf16.mxu0 0
    %779 = vmatpush2.bf16.msra.mxu0 0
    %780 = vmatprep.subr.bf16.mxu0 0
    %781 = vmatpush2.bf16.msra.mxu0 0
    %782 = vmatprep.subr.bf16.mxu0 0
    %783 = vmatpush2.bf16.msra.mxu0 0
    %784 = vmatprep.subr.bf16.mxu0 0
    %785 = vmatpush2.bf16.msra.mxu0 0
    %786 = vmatprep.subr.bf16.mxu0 0
    %787 = vmatpush2.bf16.msra.mxu0 0
    %788 = vmatprep.subr.bf16.mxu0 0
    %789 = vmatpush2.bf16.msra.mxu0 0
    %790 = vmatprep.subr.bf16.mxu0 0
    %791 = vmatpush2.bf16.msra.mxu0 0
    %792 = vmatprep.subr.bf16.mxu0 0
    %793 = vmatpush2.bf16.msra.mxu0 0
    %794 = vmatprep.mubr.bf16.mxu0 0
    %795 = vmatmul.mubr.bf16.gmra.mxu0 %v760
    %v796 = vpop.f32.mrf.mxu0
    %v797 = vadd.f32 %v604, %v796
    %v798 = vpop.f32.mrf.mxu0
    %v799 = vpop.f32.mrf.mxu0
    %v800 = vadd.f32 %v608, %v799
    %v801 = vpop.f32.mrf.mxu0
    %802 = vdwg.mxu0
    %v803 = vld [vmem:[%s10] sm:$0x1]
    %v805 = vlaneseq
    %v806 = vshrl.u32 %v805, 7
    %v807 = vsub.s32 0, %v806
    %v808 = vrot.slane %v803, %v807
    %v810 = vadd.f32 %v797, %v808
    %v811 = vadd.f32 %v800, %v808
    %v812 = vpack.c.bf16 %v811, %v810
    %v813 = vld [vmem:[#allocation12] sm:$0xf]
    %v814 = vld [vmem:[#allocation12 + $0x4] sm:$0xf]
    %v815 = vld [vmem:[#allocation12 + $0x8] sm:$0xf]
    %v816 = vld [vmem:[#allocation12 + $0xc] sm:$0xf]
    %v817 = vld [vmem:[#allocation12 + $0x10] sm:$0xf]
    %v818 = vld [vmem:[#allocation12 + $0x14] sm:$0xf]
    %v819 = vld [vmem:[#allocation12 + $0x18] sm:$0xf]
    %v820 = vld [vmem:[#allocation12 + $0x1c] sm:$0xf]
    %v821 = vld [vmem:[#allocation12 + $0x20] sm:$0xf]
    %v822 = vld [vmem:[#allocation12 + $0x24] sm:$0xf]
    %v823 = vld [vmem:[#allocation12 + $0x28] sm:$0xf]
    %v824 = vld [vmem:[#allocation12 + $0x2c] sm:$0xf]
    %v825 = vld [vmem:[#allocation12 + $0x30] sm:$0xf]
    %v826 = vld [vmem:[#allocation12 + $0x34] sm:$0xf]
    %v827 = vld [vmem:[#allocation12 + $0x38] sm:$0xf]
    %v828 = vld [vmem:[#allocation12 + $0x3c] sm:$0xf]
    %v829 = vld [vmem:[%s12] sm:$0x1]
    %v831 = vlaneseq
    %v832 = vshrl.u32 %v831, 7
    %v833 = vsub.s32 0, %v832
    %v834 = vrot.slane %v829, %v833
    %v852 = vunpack.c.l.b16 %v813
    %v853 = vunpack.c.l.b16 %v814
    %v854 = vunpack.c.l.b16 %v815
    %v855 = vunpack.c.l.b16 %v816
    %v856 = vunpack.c.l.b16 %v817
    %v857 = vunpack.c.l.b16 %v818
    %v858 = vunpack.c.l.b16 %v819
    %v859 = vunpack.c.l.b16 %v820
    %v860 = vunpack.c.l.b16 %v821
    %v861 = vunpack.c.l.b16 %v822
    %v862 = vunpack.c.l.b16 %v823
    %v863 = vunpack.c.l.b16 %v824
    %v864 = vunpack.c.l.b16 %v825
    %v865 = vunpack.c.l.b16 %v826
    %v866 = vunpack.c.l.b16 %v827
    %v867 = vunpack.c.l.b16 %v828
    %v868 = vpack.c.b16 %v853, %v852
    %v869 = vpack.c.b16 %v855, %v854
    %v870 = vpack.c.b16 %v857, %v856
    %v871 = vpack.c.b16 %v859, %v858
    %v872 = vpack.c.b16 %v861, %v860
    %v873 = vpack.c.b16 %v863, %v862
    %v874 = vpack.c.b16 %v865, %v864
    %v875 = vpack.c.b16 %v867, %v866
    %884 = vmatprep.subr.bf16.mxu0 0
    %885 = vmatpush1.bf16.msra.mxu0 %v875
    %886 = vmatprep.subr.bf16.mxu0 0
    %887 = vmatpush1.bf16.msra.mxu0 %v874
    %888 = vmatprep.subr.bf16.mxu0 0
    %889 = vmatpush1.bf16.msra.mxu0 %v873
    %890 = vmatprep.subr.bf16.mxu0 0
    %891 = vmatpush1.bf16.msra.mxu0 %v872
    %892 = vmatprep.subr.bf16.mxu0 0
    %893 = vmatpush1.bf16.msra.mxu0 %v871
    %894 = vmatprep.subr.bf16.mxu0 0
    %895 = vmatpush1.bf16.msra.mxu0 %v870
    %896 = vmatprep.subr.bf16.mxu0 0
    %897 = vmatpush1.bf16.msra.mxu0 %v869
    %898 = vmatprep.subr.bf16.mxu0 0
    %899 = vmatpush1.bf16.msra.mxu0 %v868
    %900 = vmatprep.subr.bf16.mxu0 0
    %901 = vmatpush2.bf16.msra.mxu0 0
    %902 = vmatprep.subr.bf16.mxu0 0
    %903 = vmatpush2.bf16.msra.mxu0 0
    %904 = vmatprep.subr.bf16.mxu0 0
    %905 = vmatpush2.bf16.msra.mxu0 0
    %906 = vmatprep.subr.bf16.mxu0 0
    %907 = vmatpush2.bf16.msra.mxu0 0
    %908 = vmatprep.subr.bf16.mxu0 0
    %909 = vmatpush2.bf16.msra.mxu0 0
    %910 = vmatprep.subr.bf16.mxu0 0
    %911 = vmatpush2.bf16.msra.mxu0 0
    %912 = vmatprep.subr.bf16.mxu0 0
    %913 = vmatpush2.bf16.msra.mxu0 0
    %914 = vmatprep.subr.bf16.mxu0 0
    %915 = vmatpush2.bf16.msra.mxu0 0
    %916 = vmatprep.mubr.bf16.mxu0 0
    %917 = vmatmul.mubr.bf16.gmra.mxu0 %v812
    %v918 = vpop.f32.mrf.mxu0
    %v919 = vadd.f32 %v834, %v918
    %v920 = vpop.f32.mrf.mxu0
    %v921 = vpop.f32.mrf.mxu0
    %v922 = vadd.f32 %v834, %v921
    %v923 = vpop.f32.mrf.mxu0
    %924 = vdwg.mxu0
    %925 = vst [vmem:[#allocation14] sm:$0xff] %v919
    %926 = vst [vmem:[#allocation14 + $0x8] sm:$0xff] %v922
    // Predicated region
    $region78: #{tpu_custom_call.1} parent=1 // pred_check
      _
    $region79: #{tpu_custom_call.1} parent=1 // pred_check_branch
      %928 = sbr.rel (0) target = $region81
    $region80: #{tpu_custom_call.1} parent=1 // pred_region
      %s930 = ssub.s32 256, 256
      %931 = vsyncadd [#allocation5], %s930
      %s932 = sshll.u32 [#allocation14], 4
      %s933 = int_to_ptr.vmem [resolvable:$true] %s932
      %938 = dma.vmem_to_hbm [thread:$0]  %s933, 256, %s13, [#allocation5], 128, 128, 8
    $region81: #{tpu_custom_call.1} parent=1 // pred_fallthru
      _
    // Predicated region
    $region82: #{tpu_custom_call.1} parent=1 // pred_check
      _
    $region83: #{tpu_custom_call.1} parent=1 // pred_check_branch
      %940 = sbr.rel (0) target = $region85
    $region84: #{tpu_custom_call.1} parent=1 // pred_region
      %941 = dma.done [#allocation5], 256
    $region85: #{tpu_custom_call.1} parent=1 // pred_fallthru
      _
    %942 = vsyncpa [#allocation4], 1
    %943 = vsyncpa [#allocation7], 1
    %944 = vsyncpa [#allocation10], 1
    %945 = vsyncpa [#allocation13], 1
    %946 = vsyncpa [#allocation5], 1

</llo_original>
